<compile_context>
chip_gen: v7x
topology: tpu7x:2x2x1
jax: 0.10.0
libtpu: 0.0.40
codegen_flags: <defaults>
</compile_context>

<pallas_src>
import functools

import jax
import jax.numpy as jnp
from jax.experimental import pallas as pl
from jax.experimental.pallas import tpu as pltpu


def _pmll_kernel(x_ref, t_ref, out_ref, sec_acc, m_acc, l_acc, *, alpha):
    j = pl.program_id(1)
    nj = pl.num_programs(1)
    neg_min = jnp.finfo(jnp.float32).min

    @pl.when(j == 0)
    def _():
        sec_acc[...] = jnp.zeros_like(sec_acc)
        m_acc[...] = jnp.full_like(m_acc, neg_min)
        l_acc[...] = jnp.zeros_like(l_acc)

    x = x_ref[...].astype(jnp.float32)   # (tn, tc) logits
    t = t_ref[...].astype(jnp.float32)   # (tn, tc) 0/1 targets
    pos = t > 0.5

    # ---- negative term: sum_j (1 - t_j) * logsumexp([0, x_j]) ----------------
    softplus = jnp.maximum(x, 0.0) + jnp.log1p(jnp.exp(-jnp.abs(x)))
    sec_acc[...] += jnp.sum((1.0 - t) * softplus, axis=1, keepdims=True)

    # ---- positive term: online logsumexp of log(sigmoid(x)) over t=1 cols ----
    blk_m = jnp.max(jnp.where(pos, x, neg_min), axis=1, keepdims=True)
    m_old = m_acc[...]
    m_new = jnp.maximum(m_old, blk_m)

    log_sig = x - softplus                               # log(sigmoid(x))
    # single full-tile exp; masked BEFORE the sum (overflow lanes selected away)
    exp_shift = jnp.where(pos, jnp.exp(log_sig - m_new), 0.0)
    l_acc[...] = l_acc[...] * jnp.exp(m_old - m_new) + jnp.sum(
        exp_shift, axis=1, keepdims=True)
    m_acc[...] = m_new

    @pl.when(j == nj - 1)
    def _():
        first = jnp.log(l_acc[...]) + m_acc[...]         # (tn, 1)
        second = sec_acc[...]                            # (tn, 1)
        # TODO(synk): torch.isfinite asserts have no in-kernel equivalent;
        # rows with zero positive labels yield -inf here (matches reference).
        out_ref[...] = jnp.concatenate(
            [second * alpha - first, first, second], axis=1)   # one store


def _round_up(n, m):
    return ((n + m - 1) // m) * m


def pmll_forward(inputs, target, *, reduce="sum", alpha=1.0, tile_n=1024):
    """Pallas implementation of PMLL.forward.  inputs/target: (N, C)."""
    N, C = inputs.shape

    # targets are exactly {0,1}: bf16 streaming is lossless and cuts HBM traffic.
    target = target.astype(jnp.bfloat16)

    ix = jnp.dtype(inputs.dtype).itemsize
    it = jnp.dtype(target.dtype).itemsize
    # sublane packing multiple per dtype: 8 (4B), 16 (2B), 32 (1B)
    sub = max(8, 8 * 4 // ix, 8 * 4 // it)

    # ---- generation-aware VMEM sizing ---------------------------------------
    try:
        phys_vmem = int(pltpu.get_tpu_info().vmem_capacity_bytes)
    except Exception:  # pragma: no cover - conservative fallback (v7x per-TC)
        phys_vmem = 64 * 1024 * 1024
    vmem_limit = int(min(phys_vmem * 3 // 4, 100 * 1024 * 1024))
    budget = vmem_limit // 2   # headroom for double-buffering + compiler scratch

    # bytes per (row,col) element: double-buffered inputs + ~6 live f32 temps
    per_elem = 2 * (ix + it) + 6 * 4

    # ---- choose row / column tiles ------------------------------------------
    tn = int(min(max(tile_n, sub), _round_up(N, sub)))
    tn = max(sub, (tn // sub) * sub)
    if tn * C * per_elem <= budget:
        tc, num_c = C, 1                       # whole label axis in one block
    else:
        while tn > sub and tn * 128 * per_elem > budget:
            tn = max(sub, ((tn // 2) // sub) * sub)
        tc = max(128, (budget // (tn * per_elem)) // 128 * 128)
        num_c = int(pl.cdiv(C, tc))
        tc = _round_up(int(pl.cdiv(C, num_c)), 128)   # rebalance C padding

    # rebalance tn so row padding never adds a whole extra tile
    n_r = _round_up(N, sub)
    num_n = int(pl.cdiv(n_r, tn))
    tn = _round_up(int(pl.cdiv(n_r, num_n)), sub)

    n_pad, c_pad = num_n * tn, num_c * tc
    if n_pad != N:   # harmless rows (x=0, t=1 -> finite), sliced off below
        inputs = jnp.pad(inputs, ((0, n_pad - N), (0, 0)))
        target = jnp.pad(target, ((0, n_pad - N), (0, 0)), constant_values=1)
    if c_pad != C:   # harmless cols (x << 0, t=0 -> contribute exactly 0)
        inputs = jnp.pad(inputs, ((0, 0), (0, c_pad - C)), constant_values=-1e4)
        target = jnp.pad(target, ((0, 0), (0, c_pad - C)))

    kernel = functools.partial(_pmll_kernel, alpha=float(alpha))
    in_spec = pl.BlockSpec((tn, tc), lambda i, j: (i, j))

    cost = pl.CostEstimate(
        flops=int(12 * n_pad * c_pad),
        transcendentals=int(3 * n_pad * c_pad),
        bytes_accessed=int(n_pad * c_pad * (ix + it) + n_pad * 3 * 4),
    )

    out = pl.pallas_call(
        kernel,
        out_shape=jax.ShapeDtypeStruct((n_pad, 3), jnp.float32),
        grid_spec=pltpu.PrefetchScalarGridSpec(
            num_scalar_prefetch=0,
            grid=(num_n, num_c),
            in_specs=[in_spec, in_spec],
            out_specs=pl.BlockSpec((tn, 3), lambda i, j: (i, 0)),
            scratch_shapes=[pltpu.VMEM((tn, 1), jnp.float32)] * 3,
        ),
        compiler_params=pltpu.CompilerParams(
            dimension_semantics=("parallel", "arbitrary"),
            vmem_limit_bytes=vmem_limit,
        ),
        cost_estimate=cost,
    )(inputs, target)

    results = out[:N, 0]
    first_part = out[:N, 1]
    second_part = out[:N, 2]

    if reduce == "mean":
        results = results.mean()
    return results, first_part.mean(), second_part.mean()


def _pmll_reference(inputs, target, *, reduce="sum", alpha=1.0):
    """Plain-JAX replica of the PyTorch forward, for verification."""
    x = inputs.astype(jnp.float32)
    t = target.astype(jnp.float32)
    softplus = jnp.logaddexp(0.0, x)
    second = jnp.sum((1.0 - t) * softplus, axis=1)
    temp = jnp.where(t > 0.5, x, jnp.finfo(x.dtype).min)
    max_temp = jnp.max(temp, axis=1, keepdims=True)
    a = max_temp + jnp.zeros_like(x)
    b = max_temp - t * x
    tmp2 = jnp.exp(-jnp.logaddexp(a, b))
    fp_ii = jnp.log(jnp.sum(t * tmp2, axis=1)) + max_temp[:, 0]
    fp_i = jnp.log(jnp.sum(t * jax.nn.sigmoid(x), axis=1))
    first = jnp.where(max_temp[:, 0] > -10.0, fp_i, fp_ii)
    results = second * alpha - first
    if reduce == "mean":
        results = results.mean()
    return results, first.mean(), second.mean()


if __name__ == "__main__":
    key = jax.random.PRNGKey(0)
    k_x, k_t = jax.random.split(key)

    N, C = 12, 32   # small; N=12 exercises the ragged-N padding path
    inputs = jax.random.normal(k_x, (N, C), dtype=jnp.float32) * 2.0
    target = (jax.random.uniform(k_t, (N, C)) < 0.3).astype(jnp.float32)
    # guarantee at least one positive label per row (module assumes this)
    target = target.at[:, 0].set(1.0)

    results, first_mean, second_mean = pmll_forward(
        inputs, target, reduce="sum", alpha=1.0
    )
    jax.block_until_ready((results, first_mean, second_mean))

    # host-side finiteness checks (replaces the torch asserts)
    assert bool(jnp.isfinite(results).all())
    assert bool(jnp.isfinite(first_mean)) and bool(jnp.isfinite(second_mean))

    # correctness check against plain-JAX reference
    ref_results, ref_first, ref_second = _pmll_reference(
        inputs, target, reduce="sum", alpha=1.0
    )
    assert jnp.allclose(results, ref_results, atol=1e-4, rtol=1e-4)
    assert jnp.allclose(first_mean, ref_first, atol=1e-4, rtol=1e-4)
    assert jnp.allclose(second_mean, ref_second, atol=1e-4, rtol=1e-4)

    print("KERNEL_OK")
</pallas_src>

<mosaic_0001>
module attributes {stable_mosaic.version = 11 : i64} {
  func.func @_pmll_kernel(%arg0: i32, %arg1: i32, %arg2: memref<16x32xf32, #tpu.memory_space<vmem>>, %arg3: memref<16x32xbf16, #tpu.memory_space<vmem>>, %arg4: memref<16x3xf32, #tpu.memory_space<vmem>>, %arg5: memref<16x1xf32, #tpu.memory_space<vmem>>, %arg6: memref<16x1xf32, #tpu.memory_space<vmem>>, %arg7: memref<16x1xf32, #tpu.memory_space<vmem>>) attributes {dimension_semantics = [#tpu.dimension_semantics<parallel>, #tpu.dimension_semantics<arbitrary>], iteration_bounds = array<i64: 1, 1>, scalar_prefetch = 0 : i64, scratch_operands = 3 : i64, tpu.core_type = #tpu.core_type<tc>, window_params = [{transform_indices = @transform_0, window_bounds = array<i64: 16, 32>}, {transform_indices = @transform_1, window_bounds = array<i64: 16, 32>}, {transform_indices = @transform_2, window_bounds = array<i64: 16, 3>}]} {
    %c0_i32 = arith.constant 0 : i32
    %0 = arith.cmpi eq, %arg1, %c0_i32 : i32
    %1 = arith.extui %0 : i1 to i32
    %c0_i32_0 = arith.constant 0 : i32
    %2 = arith.cmpi ne, %1, %c0_i32_0 : i32
    scf.if %2 {
      %cst_26 = arith.constant 0.000000e+00 : f32
      %48 = vector.broadcast %cst_26 : f32 to vector<16x1xf32>
      %c0_27 = arith.constant 0 : index
      %c0_28 = arith.constant 0 : index
      %49 = vector.load %arg5[%c0_27, %c0_28] : memref<16x1xf32, #tpu.memory_space<vmem>>, vector<16x1xf32>
      tpu.vector_store %arg5[%c0_27, %c0_28], %48 {strides = array<i32>} : memref<16x1xf32, #tpu.memory_space<vmem>>, vector<16x1xf32>,
      %cst_29 = arith.constant -3.40282347E+38 : f32
      %50 = vector.broadcast %cst_29 : f32 to vector<16x1xf32>
      %c0_30 = arith.constant 0 : index
      %c0_31 = arith.constant 0 : index
      %51 = vector.load %arg6[%c0_30, %c0_31] : memref<16x1xf32, #tpu.memory_space<vmem>>, vector<16x1xf32>
      tpu.vector_store %arg6[%c0_30, %c0_31], %50 {strides = array<i32>} : memref<16x1xf32, #tpu.memory_space<vmem>>, vector<16x1xf32>,
      %cst_32 = arith.constant 0.000000e+00 : f32
      %52 = vector.broadcast %cst_32 : f32 to vector<16x1xf32>
      %c0_33 = arith.constant 0 : index
      %c0_34 = arith.constant 0 : index
      %53 = vector.load %arg7[%c0_33, %c0_34] : memref<16x1xf32, #tpu.memory_space<vmem>>, vector<16x1xf32>
      tpu.vector_store %arg7[%c0_33, %c0_34], %52 {strides = array<i32>} : memref<16x1xf32, #tpu.memory_space<vmem>>, vector<16x1xf32>,
    } else {
    }
    %c0 = arith.constant 0 : index
    %c0_1 = arith.constant 0 : index
    %3 = vector.load %arg2[%c0, %c0_1] : memref<16x32xf32, #tpu.memory_space<vmem>>, vector<16x32xf32>
    %c0_2 = arith.constant 0 : index
    %c0_3 = arith.constant 0 : index
    %4 = vector.load %arg3[%c0_2, %c0_3] : memref<16x32xbf16, #tpu.memory_space<vmem>>, vector<16x32xbf16>
    %5 = arith.extf %4 : vector<16x32xbf16> to vector<16x32xf32>
    %cst = arith.constant 5.000000e-01 : f32
    %6 = vector.broadcast %cst : f32 to vector<16x32xf32>
    %7 = arith.cmpf ogt, %5, %6 : vector<16x32xf32>
    %cst_4 = arith.constant 0.000000e+00 : f32
    %8 = vector.broadcast %cst_4 : f32 to vector<16x32xf32>
    %9 = arith.maximumf %3, %8 : vector<16x32xf32>
    %10 = math.absf %3 : vector<16x32xf32>
    %cst_5 = arith.constant 0.000000e+00 : f32
    %11 = vector.broadcast %cst_5 : f32 to vector<16x32xf32>
    %12 = arith.subf %11, %10 : vector<16x32xf32>
    %13 = math.exp %12 : vector<16x32xf32>
    %14 = math.log1p %13 : vector<16x32xf32>
    %15 = arith.addf %9, %14 : vector<16x32xf32>
    %c0_6 = arith.constant 0 : index
    %c0_7 = arith.constant 0 : index
    %16 = vector.load %arg5[%c0_6, %c0_7] : memref<16x1xf32, #tpu.memory_space<vmem>>, vector<16x1xf32>
    %cst_8 = arith.constant 1.000000e+00 : f32
    %17 = vector.broadcast %cst_8 : f32 to vector<16x32xf32>
    %18 = arith.subf %17, %5 : vector<16x32xf32>
    %19 = arith.mulf %18, %15 : vector<16x32xf32>
    %cst_9 = arith.constant dense<0.000000e+00> : vector<16xf32>
    %20 = vector.multi_reduction <add>, %19, %cst_9 [1] : vector<16x32xf32> to vector<16xf32>
    %21 = vector.shape_cast %20 : vector<16xf32> to vector<16x1xf32>
    %22 = arith.addf %16, %21 : vector<16x1xf32>
    %c0_10 = arith.constant 0 : index
    %c0_11 = arith.constant 0 : index
    %23 = vector.load %arg5[%c0_10, %c0_11] : memref<16x1xf32, #tpu.memory_space<vmem>>, vector<16x1xf32>
    tpu.vector_store %arg5[%c0_10, %c0_11], %22 {strides = array<i32>} : memref<16x1xf32, #tpu.memory_space<vmem>>, vector<16x1xf32>,
    %cst_12 = arith.constant -3.40282347E+38 : f32
    %24 = vector.broadcast %cst_12 : f32 to vector<16x32xf32>
    %25 = arith.select %7, %3, %24 : vector<16x32xi1>, vector<16x32xf32>
    %cst_13 = arith.constant dense<0xFF800000> : vector<16xf32>
    %26 = vector.multi_reduction <maximumf>, %25, %cst_13 [1] : vector<16x32xf32> to vector<16xf32>
    %27 = vector.shape_cast %26 : vector<16xf32> to vector<16x1xf32>
    %c0_14 = arith.constant 0 : index
    %c0_15 = arith.constant 0 : index
    %28 = vector.load %arg6[%c0_14, %c0_15] : memref<16x1xf32, #tpu.memory_space<vmem>>, vector<16x1xf32>
    %29 = arith.maximumf %28, %27 : vector<16x1xf32>
    %30 = arith.subf %3, %15 : vector<16x32xf32>
    %31 = vector.broadcast %29 : vector<16x1xf32> to vector<16x32xf32>
    %32 = arith.subf %30, %31 : vector<16x32xf32>
    %33 = math.exp %32 : vector<16x32xf32>
    %cst_16 = arith.constant 0.000000e+00 : f32
    %34 = vector.broadcast %cst_16 : f32 to vector<16x32xf32>
    %35 = arith.select %7, %33, %34 : vector<16x32xi1>, vector<16x32xf32>
    %c0_17 = arith.constant 0 : index
    %c0_18 = arith.constant 0 : index
    %36 = vector.load %arg7[%c0_17, %c0_18] : memref<16x1xf32, #tpu.memory_space<vmem>>, vector<16x1xf32>
    %37 = arith.subf %28, %29 : vector<16x1xf32>
    %38 = math.exp %37 : vector<16x1xf32>
    %39 = arith.mulf %36, %38 : vector<16x1xf32>
    %cst_19 = arith.constant dense<0.000000e+00> : vector<16xf32>
    %40 = vector.multi_reduction <add>, %35, %cst_19 [1] : vector<16x32xf32> to vector<16xf32>
    %41 = vector.shape_cast %40 : vector<16xf32> to vector<16x1xf32>
    %42 = arith.addf %39, %41 : vector<16x1xf32>
    %c0_20 = arith.constant 0 : index
    %c0_21 = arith.constant 0 : index
    %43 = vector.load %arg7[%c0_20, %c0_21] : memref<16x1xf32, #tpu.memory_space<vmem>>, vector<16x1xf32>
    tpu.vector_store %arg7[%c0_20, %c0_21], %42 {strides = array<i32>} : memref<16x1xf32, #tpu.memory_space<vmem>>, vector<16x1xf32>,
    %c0_22 = arith.constant 0 : index
    %c0_23 = arith.constant 0 : index
    %44 = vector.load %arg6[%c0_22, %c0_23] : memref<16x1xf32, #tpu.memory_space<vmem>>, vector<16x1xf32>
    tpu.vector_store %arg6[%c0_22, %c0_23], %29 {strides = array<i32>} : memref<16x1xf32, #tpu.memory_space<vmem>>, vector<16x1xf32>,
    %c0_i32_24 = arith.constant 0 : i32
    %45 = arith.cmpi eq, %arg1, %c0_i32_24 : i32
    %46 = arith.extui %45 : i1 to i32
    %c0_i32_25 = arith.constant 0 : i32
    %47 = arith.cmpi ne, %46, %c0_i32_25 : i32
    scf.if %47 {
      %c0_26 = arith.constant 0 : index
      %c0_27 = arith.constant 0 : index
      %48 = vector.load %arg7[%c0_26, %c0_27] : memref<16x1xf32, #tpu.memory_space<vmem>>, vector<16x1xf32>
      %49 = math.log %48 : vector<16x1xf32>
      %c0_28 = arith.constant 0 : index
      %c0_29 = arith.constant 0 : index
      %50 = vector.load %arg6[%c0_28, %c0_29] : memref<16x1xf32, #tpu.memory_space<vmem>>, vector<16x1xf32>
      %51 = arith.addf %49, %50 : vector<16x1xf32>
      %c0_30 = arith.constant 0 : index
      %c0_31 = arith.constant 0 : index
      %52 = vector.load %arg5[%c0_30, %c0_31] : memref<16x1xf32, #tpu.memory_space<vmem>>, vector<16x1xf32>
      %cst_32 = arith.constant 1.000000e+00 : f32
      %53 = vector.broadcast %cst_32 : f32 to vector<16x1xf32>
      %54 = arith.mulf %52, %53 : vector<16x1xf32>
      %55 = arith.subf %54, %51 : vector<16x1xf32>
      %56 = tpu.concatenate %55, %51, %52 in 1 : vector<16x1xf32>, vector<16x1xf32>, vector<16x1xf32> -> vector<16x3xf32>
      %c0_33 = arith.constant 0 : index
      %c0_34 = arith.constant 0 : index
      %57 = vector.load %arg4[%c0_33, %c0_34] : memref<16x3xf32, #tpu.memory_space<vmem>>, vector<16x3xf32>
      tpu.vector_store %arg4[%c0_33, %c0_34], %56 {strides = array<i32>} : memref<16x3xf32, #tpu.memory_space<vmem>>, vector<16x3xf32>,
    } else {
    }
    return
  }
  func.func @transform_0(%arg0: i32, %arg1: i32) -> (i32, i32) {
    %c0_i32 = arith.constant 0 : i32
    return %arg0, %arg1 : i32, i32
  }
  func.func @transform_1(%arg0: i32, %arg1: i32) -> (i32, i32) {
    %c0_i32 = arith.constant 0 : i32
    return %arg0, %arg1 : i32, i32
  }
  func.func @transform_2(%arg0: i32, %arg1: i32) -> (i32, i32) {
    %c0_i32 = arith.constant 0 : i32
    %c0_i32_0 = arith.constant 0 : i32
    return %arg0, %c0_i32 : i32, i32
  }
}

</mosaic_0001>

<llo_original>
// kernel: tpu_custom_call.1
$region0: #{tpu_custom_call.1}
  #allocation0 [shape = 'u32[]', space=smem, size = 0x4, offset = 0x4, fixed_abs, tag = 'smem constant byte address 0x4 - core index']
  #allocation1 [shape = 'u32[144,128]{1,0:T(1,128)}', space=vmem, size = 0x12000, scoped, tag = 'internal scratch']
  #allocation2 [shape = 'f32[16,1]{1,0:T(8,128)}', space=vmem, size = 0x2000, scoped, tag = 'scratch operand']
  #allocation3 [shape = 'f32[16,1]{1,0:T(8,128)}', space=vmem, size = 0x2000, scoped, tag = 'scratch operand']
  #allocation4 [shape = 'f32[16,1]{1,0:T(8,128)}', space=vmem, size = 0x2000, scoped, tag = 'scratch operand']
  %s0 = inlined_call_operand.hbm [shape: f32[16,32], index: 0, kind: input, shape index: {}]
  %s1 = inlined_call_operand.hbm [shape: bf16[16,32], index: 1, kind: input, shape index: {}]
  %s2 = inlined_call_operand.vmem [shape: f32[16,3], index: 2, kind: output, shape index: {}]
  %s3 = sld [smem:[#allocation0]]
  $region34: #{tpu_custom_call.1} parent=0
    _
  %s5 = ssub.s32 1, %s3
  %s6 = scalar_select 0, %s5, %s3
  $region1: #{tpu_custom_call.1} parent=0
    #allocation5 [shape = 'u8[8192]{0}', space=vmem, size = 0x2000, scoped, tag = 'input window, operand 0, single buffered']
    #allocation6 [shape = 's32[1]{0}', space=sflag, size = 0x4, scoped, tag = 'scoped memory for tpu_custom_call.1']
    #allocation7 [shape = 'u8[4096]{0}', space=vmem, size = 0x1000, scoped, tag = 'input window, operand 1, single buffered']
    #allocation8 [shape = 's32[1]{0}', space=sflag, size = 0x4, scoped, tag = 'scoped memory for tpu_custom_call.1']
    %7 = vsyncpa [#allocation6], 0
    %8 = vsyncpa [#allocation8], 0
    // Predicated region
    $region2: #{tpu_custom_call.1} parent=1 // pred_check
      _
    $region3: #{tpu_custom_call.1} parent=1 // pred_check_branch
      %10 = sbr.rel (0) target = $region5
    $region4: #{tpu_custom_call.1} parent=1 // pred_region
      %s12 = ssub.s32 256, 256
      %13 = vsyncadd [#allocation6], %s12
      %s14 = sshll.u32 [#allocation5], 4
      %s15 = int_to_ptr.vmem [resolvable:$true] %s14
      %20 = dma.hbm_to_vmem [thread:$0]  %s0, 256, %s15, [#allocation6], 128, 128, 8
    $region5: #{tpu_custom_call.1} parent=1 // pred_fallthru
      _
    // Predicated region
    $region6: #{tpu_custom_call.1} parent=1 // pred_check
      _
    $region7: #{tpu_custom_call.1} parent=1 // pred_check_branch
      %22 = sbr.rel (0) target = $region9
    $region8: #{tpu_custom_call.1} parent=1 // pred_region
      %s24 = ssub.s32 128, 128
      %25 = vsyncadd [#allocation8], %s24
      %s26 = sshll.u32 [#allocation7], 4
      %s27 = int_to_ptr.vmem [resolvable:$true] %s26
      %32 = dma.hbm_to_vmem [thread:$0]  %s1, 128, %s27, [#allocation8], 64, 64, 4
    $region9: #{tpu_custom_call.1} parent=1 // pred_fallthru
      _
    // Predicated region
    $region10: #{tpu_custom_call.1} parent=1 // pred_check
      _
    $region11: #{tpu_custom_call.1} parent=1 // pred_check_branch
      %34 = sbr.rel (0) target = $region13
    $region12: #{tpu_custom_call.1} parent=1 // pred_region
      %35 = dma.done [#allocation6], 256
    $region13: #{tpu_custom_call.1} parent=1 // pred_fallthru
      _
    // Predicated region
    $region14: #{tpu_custom_call.1} parent=1 // pred_check
      _
    $region15: #{tpu_custom_call.1} parent=1 // pred_check_branch
      %37 = sbr.rel (0) target = $region17
    $region16: #{tpu_custom_call.1} parent=1 // pred_region
      %38 = dma.done [#allocation8], 128
    $region17: #{tpu_custom_call.1} parent=1 // pred_fallthru
      _
    %p39 = scmp.eq.s32.totalorder 0, 0
    // Predicated region
    $region18: #{tpu_custom_call.1} parent=1 // pred_check
      %p40 = pneg %p39
    $region19: #{tpu_custom_call.1} parent=1 // pred_check_branch
      %42 = sbr.rel (%p40) target = $region21
    $region20: #{tpu_custom_call.1} parent=1 // pred_region
      %vm43 = vcmask 7168
      %44 = vst.msk [vmem:[#allocation2] sm:$0xff] %vm43, 0.0
      %45 = vst.msk [vmem:[#allocation2 + $0x8] sm:$0xff] %vm43, 0.0
      %46 = vst.msk [vmem:[#allocation3] sm:$0xff] %vm43, -3.4028235e+38
      %47 = vst.msk [vmem:[#allocation3 + $0x8] sm:$0xff] %vm43, -3.4028235e+38
      %48 = vst.msk [vmem:[#allocation4] sm:$0xff] %vm43, 0.0
      %49 = vst.msk [vmem:[#allocation4 + $0x8] sm:$0xff] %vm43, 0.0
    $region21: #{tpu_custom_call.1} parent=1 // pred_fallthru
      _
    %v50 = vld [vmem:[#allocation5] sm:$0xff]
    %v51 = vld [vmem:[#allocation5 + $0x8] sm:$0xff]
    %v52 = vld [vmem:[#allocation7] sm:$0xf]
    %v53 = vld [vmem:[#allocation7 + $0x4] sm:$0xf]
    %v54 = vunpack.c.l.bf16 %v52
    %v55 = vunpack.c.l.bf16 %v53
    %vm56 = vcmp.gt.f32.partialorder %v54, 0.5
    %vm57 = vcmp.gt.f32.partialorder %v55, 0.5
    %v58 = vmax.f32 %v50, 0.0
    %v59 = vmax.f32 %v51, 0.0
    %v60 = vand.u32 2147483647, %v50
    %v61 = vand.u32 2147483647, %v51
    %v62 = vsub.f32 0.0, %v60
    %v63 = vsub.f32 0.0, %v61
    %v64 = vmul.f32 %v62, 1.442695
    %v65 = vpow.pop %v64
    %v66 = vmul.f32 %v63, 1.442695
    %v67 = vpow.pop %v66
    %v68 = vadd.f32 %v65, 1.0
    %v69 = vlog2.pop %v68
    %v70 = vmul.f32 %v69, 0.6931472
    %v71 = vmul.f32 -0.5, %v65
    %v72 = vadd.f32 %v71, 1.0
    %v73 = vmul.f32 %v72, %v65
    %v74 = vand.u32 2147483647, %v65
    %vm75 = vcmp.lt.f32.partialorder %v74, 0.0004427343
    %v76 = vsel %vm75, %v73, %v70
    %v77 = vadd.f32 %v67, 1.0
    %v78 = vlog2.pop %v77
    %v79 = vmul.f32 %v78, 0.6931472
    %v80 = vmul.f32 -0.5, %v67
    %v81 = vadd.f32 %v80, 1.0
    %v82 = vmul.f32 %v81, %v67
    %v83 = vand.u32 2147483647, %v67
    %vm84 = vcmp.lt.f32.partialorder %v83, 0.0004427343
    %v85 = vsel %vm84, %v82, %v79
    %v86 = vadd.f32 %v58, %v76
    %v87 = vadd.f32 %v59, %v85
    %v88 = vld [vmem:[#allocation2] sm:$0xff]
    %v89 = vld [vmem:[#allocation2 + $0x8] sm:$0xff]
    %v90 = vsub.f32 1.0, %v54
    %v91 = vsub.f32 1.0, %v55
    %v92 = vmul.f32 %v90, %v86
    %v93 = vmul.f32 %v91, %v87
    %vm94 = vcmask 261120
    %v95 = vsel %vm94, %v92, 0.0
    %96 = vadd.xlane.f32.xlu0 %v95
    %v97 = vpop.xlane.xlu0 %96
    %v98 = vsel %vm94, %v93, 0.0
    %99 = vadd.xlane.f32.xlu0 %v98
    %v100 = vpop.xlane.xlu0 %99
    %v101 = vadd.f32 %v88, %v97
    %v102 = vadd.f32 %v89, %v100
    %vm103 = vcmask 7168
    %104 = vst.msk [vmem:[#allocation2] sm:$0xff] %vm103, %v101
    %105 = vst.msk [vmem:[#allocation2 + $0x8] sm:$0xff] %vm103, %v102
    %v106 = vsel %vm56, %v50, -3.4028235e+38
    %v107 = vsel %vm57, %v51, -3.4028235e+38
    %v108 = vsel %vm94, %v106, -inf
    %109 = vmax.xlane.f32.xlu0 %v108
    %v110 = vpop.xlane.xlu0 %109
    %v111 = vsel %vm94, %v107, -inf
    %112 = vmax.xlane.f32.xlu0 %v111
    %v113 = vpop.xlane.xlu0 %112
    %v114 = vld [vmem:[#allocation3] sm:$0xff]
    %v115 = vld [vmem:[#allocation3 + $0x8] sm:$0xff]
    %v116 = vmax.f32 %v114, %v110
    %v117 = vmax.f32 %v115, %v113
    %v118 = vsub.f32 %v50, %v86
    %v119 = vsub.f32 %v51, %v87
    %121 = vset.pattern.permute.xlu0 0
    %122 = vperm.xlu0 %121, %v116
    %v123 = vpop.permute.xlu0 %122
    %126 = vset.pattern.permute.xlu0 0
    %127 = vperm.xlu0 %126, %v117
    %v128 = vpop.permute.xlu0 %127
    %v130 = vsub.f32 %v118, %v123
    %v131 = vsub.f32 %v119, %v128
    %v132 = vmul.f32 %v130, 1.442695
    %v133 = vpow.pop %v132
    %v134 = vmul.f32 %v131, 1.442695
    %v135 = vpow.pop %v134
    %v136 = vsel %vm56, %v133, 0.0
    %v137 = vsel %vm57, %v135, 0.0
    %v138 = vld [vmem:[#allocation4] sm:$0xff]
    %v139 = vld [vmem:[#allocation4 + $0x8] sm:$0xff]
    %v140 = vsub.f32 %v114, %v116
    %v141 = vsub.f32 %v115, %v117
    %v142 = vmul.f32 %v140, 1.442695
    %v143 = vpow.pop %v142
    %v144 = vmul.f32 %v141, 1.442695
    %v145 = vpow.pop %v144
    %v146 = vmul.f32 %v138, %v143
    %v147 = vmul.f32 %v139, %v145
    %v148 = vsel %vm94, %v136, 0.0
    %149 = vadd.xlane.f32.xlu0 %v148
    %v150 = vpop.xlane.xlu0 %149
    %v151 = vsel %vm94, %v137, 0.0
    %152 = vadd.xlane.f32.xlu0 %v151
    %v153 = vpop.xlane.xlu0 %152
    %v154 = vadd.f32 %v146, %v150
    %v155 = vadd.f32 %v147, %v153
    %156 = vst.msk [vmem:[#allocation4] sm:$0xff] %vm103, %v154
    %157 = vst.msk [vmem:[#allocation4 + $0x8] sm:$0xff] %vm103, %v155
    %158 = vst.msk [vmem:[#allocation3] sm:$0xff] %vm103, %v116
    %159 = vst.msk [vmem:[#allocation3 + $0x8] sm:$0xff] %vm103, %v117
    // Predicated region
    $region22: #{tpu_custom_call.1} parent=1 // pred_check
      %p160 = pneg %p39
    $region23: #{tpu_custom_call.1} parent=1 // pred_check_branch
      %162 = sbr.rel (%p160) target = $region25
    $region24: #{tpu_custom_call.1} parent=1 // pred_region
      %v163 = vld [vmem:[#allocation4] sm:$0xff]
      %v164 = vld [vmem:[#allocation4 + $0x8] sm:$0xff]
      %v165 = vlog2.pop %v163
      %v166 = vmul.f32 %v165, 0.6931472
      %v167 = vlog2.pop %v164
      %v168 = vmul.f32 %v167, 0.6931472
      %v169 = vld [vmem:[#allocation3] sm:$0xff]
      %v170 = vld [vmem:[#allocation3 + $0x8] sm:$0xff]
      %v171 = vadd.f32 %v166, %v169
      %v172 = vadd.f32 %v168, %v170
      %v173 = vld [vmem:[#allocation2] sm:$0xff]
      %v174 = vld [vmem:[#allocation2 + $0x8] sm:$0xff]
      %v175 = vsub.f32 %v173, %v171
      %v176 = vsub.f32 %v174, %v172
      %179 = vrot.lane.b32.xlu0 %v171, 1
      %v180 = vpop.permute.xlu0 %179
      %181 = vrot.lane.b32.xlu0 %v172, 1
      %v182 = vpop.permute.xlu0 %181
      %187 = vrot.lane.b32.xlu0 %v173, 2
      %v188 = vpop.permute.xlu0 %187
      %189 = vrot.lane.b32.xlu0 %v174, 2
      %v190 = vpop.permute.xlu0 %189
      %v193 = vsel %vm103, %v175, %v180
      %v194 = vsel %vm103, %v176, %v182
      %vm195 = vcmask 15360
      %v196 = vsel %vm195, %v193, %v188
      %v197 = vsel %vm195, %v194, %v190
      %vm198 = vcmask 23552
      %199 = vst.msk [vmem:[%s2] sm:$0xff] %vm198, %v196
      %200 = vst.msk [vmem:[%s2 + $0x8] sm:$0xff] %vm198, %v197
    $region25: #{tpu_custom_call.1} parent=1 // pred_fallthru
      _
    // Predicated region
    $region26: #{tpu_custom_call.1} parent=1 // pred_check
      _
    $region27: #{tpu_custom_call.1} parent=1 // pred_check_branch
      %202 = sbr.rel (0) target = $region29
    $region28: #{tpu_custom_call.1} parent=1 // pred_region
      _
    $region29: #{tpu_custom_call.1} parent=1 // pred_fallthru
      _
    // Predicated region
    $region30: #{tpu_custom_call.1} parent=1 // pred_check
      _
    $region31: #{tpu_custom_call.1} parent=1 // pred_check_branch
      %204 = sbr.rel (0) target = $region33
    $region32: #{tpu_custom_call.1} parent=1 // pred_region
      _
    $region33: #{tpu_custom_call.1} parent=1 // pred_fallthru
      _
    %205 = vsyncpa [#allocation6], 1
    %206 = vsyncpa [#allocation8], 1

</llo_original>
